<compile_context>
chip_gen: v6e
topology: v6e:2x2x1
jax: 0.10.0
libtpu: 0.0.40
codegen_flags: <defaults>
</compile_context>

<pallas_src>
from functools import partial

import jax
import jax.numpy as jnp
import numpy as np
from jax.experimental import pallas as pl
from jax.experimental.pallas import tpu as pltpu

_LANE = 128


def _round_up(a, m):
    return ((a + m - 1) // m) * m


def _image_grad_kernel(x_ref, rmask_ref, bmask_ref, gx_ref, gy_ref, *, W, n_pad):
    """One block: x (Rt, n_pad) -> grad_x, grad_y (Rt, n_pad); rows independent."""
    x = x_ref[...]                                        # (Rt, n_pad)

    # Edge masks precomputed host-side (no in-kernel integer mod/div).
    # Broadcast once and reuse (broadcast_in_dim is not CSE'd).
    at_right = jnp.broadcast_to(rmask_ref[...] != 0, x.shape)
    at_bottom = jnp.broadcast_to(bmask_ref[...] != 0, x.shape)

    # neighbour at (i, j+1) with PyTorch 'reflect' at the right edge:
    #   interior: x[p+1]  (roll by n_pad-1)    edge j==W-1: x[p-1] (roll by 1)
    def shift_right_reflect(a):
        return jnp.where(at_right,
                         pltpu.roll(a, 1, axis=1),
                         pltpu.roll(a, n_pad - 1, axis=1))

    # neighbour at (i+1, j) with 'reflect' at the bottom edge:
    #   interior: x[p+W]  (roll by n_pad-W)    edge i==H-1: x[p-W] (roll by W)
    x_d = jnp.where(at_bottom,
                    pltpu.roll(x, W, axis=1),
                    pltpu.roll(x, n_pad - W, axis=1))
    x_r = shift_right_reflect(x)                          # x_pad[i,   j+1]
    x_dr = shift_right_reflect(x_d)                       # x_pad[i+1, j+1]
    # TODO(synk): for W >= 128 (multiple of 128) a (Rt, H, W) block layout would turn
    # these 6 lane-rolls into +/-1 sublane/lane rolls (less XLU pressure on v6e/v7x).

    gx_ref[...] = x_d - x_dr                              # [[0,0],[1,-1]] stencil
    gy_ref[...] = x_r - x_dr                              # [[0,1],[0,-1]] stencil


def image_grad(x, *, pad_mode="reflect"):
    """Pallas TPU equivalent of ImageGrad.forward. x: (B, C, H, W) float."""
    # TODO(synk): pad_mode='valid' branch (no padding, (H-1, W-1) outputs) not implemented.
    assert pad_mode == "reflect"
    B, C, H, W = x.shape
    if H < 2 or W < 2:
        raise ValueError("reflect padding needs H >= 2 and W >= 2")

    R = B * C
    n = H * W
    n_pad = _round_up(n, _LANE)          # lane-dense (128-multiple) stores
    x2 = x.reshape(R, n)
    if n_pad != n:
        x2 = jnp.pad(x2, ((0, 0), (0, n_pad - n)))

    # Precomputed edge masks: compile-time constants, tiny, constant index_map.
    lane = np.arange(n_pad, dtype=np.int64)
    at_right = (((lane % W) == (W - 1)) & (lane < n)).astype(np.int32)[None, :]
    at_bottom = ((lane >= (H - 1) * W) & (lane < n)).astype(np.int32)[None, :]
    at_right = jnp.asarray(at_right)
    at_bottom = jnp.asarray(at_bottom)

    # --- Row tile from live-set math ----------------------------------------
    # live VMEM ~ (1 input + 2 outputs) * 2 pipeline buffers * block_bytes
    #           = 6 * block_bytes, plus up to ~3 block-sized temporaries if
    # Mosaic spills the roll/select chain.  Target 2-4 MiB blocks (~85% of the
    # HBM roofline in measured tile sweeps); cap so the live set fits v7x's
    # 64 MiB per-TC VMEM; raise vmem_limit_bytes past the scoped default.
    itemsize = jnp.dtype(x.dtype).itemsize
    sub = {4: 8, 2: 16, 1: 32}.get(itemsize, 8)           # dtype-aware sublane tile
    try:
        vmem_cap = int(pltpu.get_tpu_info().vmem_capacity_bytes)
    except Exception:
        vmem_cap = 64 * 1024 * 1024                       # assume smallest (v7x per-TC)
    if vmem_cap >= 128 * 1024 * 1024:                     # v5e / v6e
        block_target = 4 * 1024 * 1024
        vmem_limit = 64 * 1024 * 1024
    else:                                                 # v7x (64 MiB per TC)
        block_target = 2 * 1024 * 1024
        vmem_limit = 40 * 1024 * 1024

    row_bytes = n_pad * itemsize
    rows_vmem = max(sub, (block_target // row_bytes) // sub * sub)
    # TODO(synk): huge single images (one `sub`-row block still over budget) would need
    # halo tiling along the lane axis; not needed at these sizes.

    if R <= sub:
        rows_per_block = R                                # single full block (legal)
    else:
        # Guarantee >= 2 grid steps so both v7x TensorCores get work.
        two_tc_cap = _round_up(pl.cdiv(R, 2), sub)
        rows_per_block = max(sub, min(rows_vmem, two_tc_cap))
        if rows_per_block >= R:
            rows_per_block = R

    grid = (pl.cdiv(R, rows_per_block),)
    data_spec = pl.BlockSpec((rows_per_block, n_pad), lambda i: (i, 0))
    mask_spec = pl.BlockSpec((1, n_pad), lambda i: (0, 0))   # constant, tiny, resident

    # TODO(synk): the remaining >15% lever is bytes moved (bf16 outputs or fusing the
    # downstream reduction); kept input-dtype outputs to match the PyTorch module.
    gx, gy = pl.pallas_call(
        partial(_image_grad_kernel, W=W, n_pad=n_pad),
        out_shape=(jax.ShapeDtypeStruct((R, n_pad), x.dtype),
                   jax.ShapeDtypeStruct((R, n_pad), x.dtype)),
        grid=grid,
        in_specs=[data_spec, mask_spec, mask_spec],
        out_specs=(data_spec, data_spec),
        compiler_params=pltpu.CompilerParams(
            dimension_semantics=("parallel",),            # shard rows across TCs
            vmem_limit_bytes=vmem_limit),
    )(x2, at_right, at_bottom)

    if n_pad != n:
        gx = gx[:, :n]
        gy = gy[:, :n]
    return gx.reshape(B, C, H, W), gy.reshape(B, C, H, W)


if __name__ == "__main__":
    key = jax.random.PRNGKey(0)
    B, C, H, W = 2, 4, 16, 16
    x = jax.random.normal(key, (B, C, H, W), jnp.float32)

    fn = jax.jit(image_grad)
    gx, gy = fn(x)
    jax.block_until_ready((gx, gy))

    # pure-JAX reference: reflect pad + the two 2x2 depthwise stencils
    xp = jnp.pad(x, ((0, 0), (0, 0), (0, 1), (0, 1)), mode="reflect")
    ref_gx = xp[..., 1:, :-1] - xp[..., 1:, 1:]
    ref_gy = xp[..., :-1, 1:] - xp[..., 1:, 1:]

    assert gx.shape == (B, C, H, W) and gy.shape == (B, C, H, W)
    assert gx.dtype == jnp.float32 and gy.dtype == jnp.float32
    assert jnp.allclose(gx, ref_gx, atol=1e-6, rtol=1e-6)
    assert jnp.allclose(gy, ref_gy, atol=1e-6, rtol=1e-6)
    print("KERNEL_OK")
</pallas_src>

<mosaic_0001>
module attributes {stable_mosaic.version = 11 : i64} {
  func.func @_image_grad_kernel(%arg0: i32, %arg1: memref<8x256xf32, #tpu.memory_space<vmem>>, %arg2: memref<1x256xi32, #tpu.memory_space<vmem>>, %arg3: memref<1x256xi32, #tpu.memory_space<vmem>>, %arg4: memref<8x256xf32, #tpu.memory_space<vmem>>, %arg5: memref<8x256xf32, #tpu.memory_space<vmem>>) attributes {dimension_semantics = [#tpu.dimension_semantics<parallel>], iteration_bounds = array<i64: 1>, scalar_prefetch = 0 : i64, scratch_operands = 0 : i64, tpu.core_type = #tpu.core_type<tc>, window_params = [{transform_indices = @transform_0, window_bounds = array<i64: 8, 256>}, {pipeline_mode = #tpu.pipeline_mode<synchronous>, transform_indices = @transform_1, window_bounds = array<i64: 1, 256>}, {pipeline_mode = #tpu.pipeline_mode<synchronous>, transform_indices = @transform_2, window_bounds = array<i64: 1, 256>}, {transform_indices = @transform_3, window_bounds = array<i64: 8, 256>}, {transform_indices = @transform_4, window_bounds = array<i64: 8, 256>}]} {
    %c0 = arith.constant 0 : index
    %c0_0 = arith.constant 0 : index
    %0 = vector.load %arg1[%c0, %c0_0] : memref<8x256xf32, #tpu.memory_space<vmem>>, vector<8x256xf32>
    %c0_1 = arith.constant 0 : index
    %c0_2 = arith.constant 0 : index
    %1 = vector.load %arg2[%c0_1, %c0_2] : memref<1x256xi32, #tpu.memory_space<vmem>>, vector<1x256xi32>
    %c0_i32 = arith.constant 0 : i32
    %2 = vector.broadcast %c0_i32 : i32 to vector<1x256xi32>
    %3 = arith.cmpi ne, %1, %2 : vector<1x256xi32>
    %4 = vector.shape_cast %3 : vector<1x256xi1> to vector<1x256xi1>
    %5 = vector.broadcast %4 : vector<1x256xi1> to vector<8x256xi1>
    %c0_3 = arith.constant 0 : index
    %c0_4 = arith.constant 0 : index
    %6 = vector.load %arg3[%c0_3, %c0_4] : memref<1x256xi32, #tpu.memory_space<vmem>>, vector<1x256xi32>
    %c0_i32_5 = arith.constant 0 : i32
    %7 = vector.broadcast %c0_i32_5 : i32 to vector<1x256xi32>
    %8 = arith.cmpi ne, %6, %7 : vector<1x256xi32>
    %9 = vector.shape_cast %8 : vector<1x256xi1> to vector<1x256xi1>
    %10 = vector.broadcast %9 : vector<1x256xi1> to vector<8x256xi1>
    %c16_i32 = arith.constant 16 : i32
    %11 = tpu.dynamic_rotate %0 by %c16_i32 dim 1 : vector<8x256xf32>, i32 -> vector<8x256xf32>
    %c240_i32 = arith.constant 240 : i32
    %12 = tpu.dynamic_rotate %0 by %c240_i32 dim 1 : vector<8x256xf32>, i32 -> vector<8x256xf32>
    %13 = arith.select %10, %11, %12 : vector<8x256xi1>, vector<8x256xf32>
    %c1_i32 = arith.constant 1 : i32
    %14 = tpu.dynamic_rotate %0 by %c1_i32 dim 1 : vector<8x256xf32>, i32 -> vector<8x256xf32>
    %c255_i32 = arith.constant 255 : i32
    %15 = tpu.dynamic_rotate %0 by %c255_i32 dim 1 : vector<8x256xf32>, i32 -> vector<8x256xf32>
    %16 = arith.select %5, %14, %15 : vector<8x256xi1>, vector<8x256xf32>
    %c1_i32_6 = arith.constant 1 : i32
    %17 = tpu.dynamic_rotate %13 by %c1_i32_6 dim 1 : vector<8x256xf32>, i32 -> vector<8x256xf32>
    %c255_i32_7 = arith.constant 255 : i32
    %18 = tpu.dynamic_rotate %13 by %c255_i32_7 dim 1 : vector<8x256xf32>, i32 -> vector<8x256xf32>
    %19 = arith.select %5, %17, %18 : vector<8x256xi1>, vector<8x256xf32>
    %20 = arith.subf %13, %19 : vector<8x256xf32>
    %c0_8 = arith.constant 0 : index
    %c0_9 = arith.constant 0 : index
    %21 = vector.load %arg4[%c0_8, %c0_9] : memref<8x256xf32, #tpu.memory_space<vmem>>, vector<8x256xf32>
    tpu.vector_store %arg4[%c0_8, %c0_9], %20 {strides = array<i32>} : memref<8x256xf32, #tpu.memory_space<vmem>>, vector<8x256xf32>,
    %22 = arith.subf %16, %19 : vector<8x256xf32>
    %c0_10 = arith.constant 0 : index
    %c0_11 = arith.constant 0 : index
    %23 = vector.load %arg5[%c0_10, %c0_11] : memref<8x256xf32, #tpu.memory_space<vmem>>, vector<8x256xf32>
    tpu.vector_store %arg5[%c0_10, %c0_11], %22 {strides = array<i32>} : memref<8x256xf32, #tpu.memory_space<vmem>>, vector<8x256xf32>,
    return
  }
  func.func @transform_0(%arg0: i32) -> (i32, i32) {
    %c0_i32 = arith.constant 0 : i32
    %c0_i32_0 = arith.constant 0 : i32
    return %arg0, %c0_i32 : i32, i32
  }
  func.func @transform_1(%arg0: i32) -> (i32, i32) {
    %c0_i32 = arith.constant 0 : i32
    %c0_i32_0 = arith.constant 0 : i32
    %c0_i32_1 = arith.constant 0 : i32
    return %c0_i32, %c0_i32_0 : i32, i32
  }
  func.func @transform_2(%arg0: i32) -> (i32, i32) {
    %c0_i32 = arith.constant 0 : i32
    %c0_i32_0 = arith.constant 0 : i32
    %c0_i32_1 = arith.constant 0 : i32
    return %c0_i32, %c0_i32_0 : i32, i32
  }
  func.func @transform_3(%arg0: i32) -> (i32, i32) {
    %c0_i32 = arith.constant 0 : i32
    %c0_i32_0 = arith.constant 0 : i32
    return %arg0, %c0_i32 : i32, i32
  }
  func.func @transform_4(%arg0: i32) -> (i32, i32) {
    %c0_i32 = arith.constant 0 : i32
    %c0_i32_0 = arith.constant 0 : i32
    return %arg0, %c0_i32 : i32, i32
  }
}

</mosaic_0001>

<llo_original>
// kernel: image_grad.1
$region0: #{image_grad.1}
  #allocation0 [shape = 'u32[]', space=smem, size = 0x4, offset = 0x4, fixed_abs, tag = 'smem constant byte address 0x4 - core index']
  #allocation1 [shape = 'u32[144,128]{1,0:T(1,128)}', space=vmem, size = 0x12000, scoped, tag = 'internal scratch']
  %s0 = inlined_call_operand.vmem [shape: f32[8,256], index: 0, kind: input, shape index: {}]
  %s1 = inlined_call_operand.vmem [shape: s32[1,256], index: 1, kind: input, shape index: {}]
  %s2 = inlined_call_operand.vmem [shape: s32[1,256], index: 2, kind: input, shape index: {}]
  %s3 = inlined_call_operand.vmem [shape: f32[8,256], index: 3, kind: output, shape index: {0}]
  %s4 = inlined_call_operand.vmem [shape: f32[8,256], index: 4, kind: output, shape index: {1}]
  %5 = xla_tuple %s3, %s4
  %s6 = sld [smem:[#allocation0]]
  $region30: #{image_grad.1} parent=0
    _
  %s8 = ssub.s32 1, %s6
  %s9 = scalar_select 0, %s8, %s6
  // Predicated region
  $region2: #{image_grad.1} parent=0 // pred_check
    _
  $region3: #{image_grad.1} parent=0 // pred_check_branch
    %11 = sbr.rel (0) target = $region5
  $region4: #{image_grad.1} parent=0 // pred_region
    _
  $region5: #{image_grad.1} parent=0 // pred_fallthru
    _
  // Predicated region
  $region6: #{image_grad.1} parent=0 // pred_check
    _
  $region7: #{image_grad.1} parent=0 // pred_check_branch
    %13 = sbr.rel (0) target = $region9
  $region8: #{image_grad.1} parent=0 // pred_region
    _
  $region9: #{image_grad.1} parent=0 // pred_fallthru
    _
  // Predicated region
  $region10: #{image_grad.1} parent=0 // pred_check
    _
  $region11: #{image_grad.1} parent=0 // pred_check_branch
    %15 = sbr.rel (0) target = $region13
  $region12: #{image_grad.1} parent=0 // pred_region
    _
  $region13: #{image_grad.1} parent=0 // pred_fallthru
    _
  %v16 = vld [vmem:[%s0] sm:$0xff]
  %v17 = vld [vmem:[%s0 + $0x8] sm:$0xff]
  %v18 = vld [vmem:[%s1] sm:$0x3]
  %vm19 = vcmp.ne.s32.totalorder %v18, 0
  %v20 = vsel %vm19, 1, 0
  %v21 = vlaneseq
  %v22 = vshrl.u32 %v21, 7
  %v23 = vsub.s32 0, %v22
  %v24 = vrot.slane %v20, %v23
  %v25 = vlaneseq
  %v26 = vshrl.u32 %v25, 7
  %v27 = vsub.s32 1, %v26
  %v28 = vrot.slane %v20, %v27
  %vm29 = vcmp.eq.s32.totalorder %v24, 1
  %vm30 = vcmp.eq.s32.totalorder %v28, 1
  %v31 = vld [vmem:[%s2] sm:$0x3]
  %vm32 = vcmp.ne.s32.totalorder %v31, 0
  %v33 = vsel %vm32, 1, 0
  %v34 = vlaneseq
  %v35 = vshrl.u32 %v34, 7
  %v36 = vsub.s32 0, %v35
  %v37 = vrot.slane %v33, %v36
  %v38 = vlaneseq
  %v39 = vshrl.u32 %v38, 7
  %v40 = vsub.s32 1, %v39
  %v41 = vrot.slane %v33, %v40
  %vm42 = vcmp.eq.s32.totalorder %v37, 1
  %vm43 = vcmp.eq.s32.totalorder %v41, 1
  %44 = vrot.lane.b32.xlu0 %v16, 16
  %v45 = vpop.permute.xlu0 %44
  %46 = vrot.lane.b32.xlu0 %v17, 16
  %v47 = vpop.permute.xlu0 %46
  %v48 = vlaneseq
  %v49 = vand.u32 %v48, 127
  %vm50 = vcmp.lt.s32.totalorder %v49, 16
  %v51 = vsel %vm50, %v45, %v47
  %v52 = vsel %vm50, %v47, %v45
  %53 = vrot.lane.b32.xlu0 %v16, 112
  %v54 = vpop.permute.xlu0 %53
  %55 = vrot.lane.b32.xlu0 %v17, 112
  %v56 = vpop.permute.xlu0 %55
  %vm57 = vcmp.lt.s32.totalorder %v49, 112
  %v58 = vsel %vm57, %v54, %v56
  %v59 = vsel %vm57, %v56, %v54
  %v60 = vsel %vm42, %v52, %v58
  %v61 = vsel %vm43, %v51, %v59
  %62 = vrot.lane.b32.xlu0 %v16, 1
  %v63 = vpop.permute.xlu0 %62
  %64 = vrot.lane.b32.xlu0 %v17, 1
  %v65 = vpop.permute.xlu0 %64
  %vm66 = vcmp.lt.s32.totalorder %v49, 1
  %v67 = vsel %vm66, %v63, %v65
  %v68 = vsel %vm66, %v65, %v63
  %69 = vrot.lane.b32.xlu0 %v16, 127
  %v70 = vpop.permute.xlu0 %69
  %71 = vrot.lane.b32.xlu0 %v17, 127
  %v72 = vpop.permute.xlu0 %71
  %vm73 = vcmp.lt.s32.totalorder %v49, 127
  %v74 = vsel %vm73, %v70, %v72
  %v75 = vsel %vm73, %v72, %v70
  %v76 = vsel %vm29, %v68, %v74
  %v77 = vsel %vm30, %v67, %v75
  %78 = vrot.lane.b32.xlu0 %v60, 1
  %v79 = vpop.permute.xlu0 %78
  %80 = vrot.lane.b32.xlu0 %v61, 1
  %v81 = vpop.permute.xlu0 %80
  %v82 = vsel %vm66, %v79, %v81
  %v83 = vsel %vm66, %v81, %v79
  %84 = vrot.lane.b32.xlu0 %v60, 127
  %v85 = vpop.permute.xlu0 %84
  %86 = vrot.lane.b32.xlu0 %v61, 127
  %v87 = vpop.permute.xlu0 %86
  %v88 = vsel %vm73, %v85, %v87
  %v89 = vsel %vm73, %v87, %v85
  %v90 = vsel %vm29, %v83, %v88
  %v91 = vsel %vm30, %v82, %v89
  %v92 = vsub.f32 %v60, %v90
  %v93 = vsub.f32 %v61, %v91
  %94 = vst [vmem:[%s3] sm:$0xff] %v92
  %95 = vst [vmem:[%s3 + $0x8] sm:$0xff] %v93
  %v96 = vsub.f32 %v76, %v90
  %v97 = vsub.f32 %v77, %v91
  %98 = vst [vmem:[%s4] sm:$0xff] %v96
  %99 = vst [vmem:[%s4 + $0x8] sm:$0xff] %v97
  // Predicated region
  $region14: #{image_grad.1} parent=0 // pred_check
    _
  $region15: #{image_grad.1} parent=0 // pred_check_branch
    %101 = sbr.rel (0) target = $region17
  $region16: #{image_grad.1} parent=0 // pred_region
    _
  $region17: #{image_grad.1} parent=0 // pred_fallthru
    _
  // Predicated region
  $region18: #{image_grad.1} parent=0 // pred_check
    _
  $region19: #{image_grad.1} parent=0 // pred_check_branch
    %103 = sbr.rel (0) target = $region21
  $region20: #{image_grad.1} parent=0 // pred_region
    _
  $region21: #{image_grad.1} parent=0 // pred_fallthru
    _
  // Predicated region
  $region22: #{image_grad.1} parent=0 // pred_check
    _
  $region23: #{image_grad.1} parent=0 // pred_check_branch
    %105 = sbr.rel (0) target = $region25
  $region24: #{image_grad.1} parent=0 // pred_region
    _
  $region25: #{image_grad.1} parent=0 // pred_fallthru
    _
  // Predicated region
  $region26: #{image_grad.1} parent=0 // pred_check
    _
  $region27: #{image_grad.1} parent=0 // pred_check_branch
    %107 = sbr.rel (0) target = $region29
  $region28: #{image_grad.1} parent=0 // pred_region
    _
  $region29: #{image_grad.1} parent=0 // pred_fallthru
    _

</llo_original>
